<compile_context>
chip_gen: v7x
topology: tpu7x:2x2x1
jax: 0.10.0
libtpu: 0.0.40
codegen_flags: <defaults>
</compile_context>

<pallas_src>
import functools
import math

import jax
import jax.numpy as jnp
from jax.experimental import pallas as pl
from jax.experimental.pallas import tpu as pltpu

# `epsilon` is a module-level global in the original PyTorch file.
EPSILON = 1e-9

# Scoped-VMEM limit requested from the compiler (safe on v5e/v6e/v7x).
_VMEM_LIMIT_BYTES = 48 * 1024 * 1024
# Budget used to derive the row tile; leaves headroom under the limit for
# compute temporaries, the log_norm buffers and compiler scratch.
_TILE_BUDGET_BYTES = 24 * 1024 * 1024


def _round_up(a, m):
    return ((a + m - 1) // m) * m


def _log_softmax_kernel(*refs, has_sna):
    if has_sna:
        sna_ref, x_ref, ln_ref, y_ref = refs
    else:
        x_ref, ln_ref, y_ref = refs

    x = x_ref[...].astype(jnp.float32)
    x_max = jnp.max(x, axis=-1, keepdims=True)
    # log_norm = log(sum(exp(x - x_max)) + eps) + x_max
    log_norm = (
        jnp.log(jnp.sum(jnp.exp(x - x_max), axis=-1, keepdims=True) + EPSILON)
        + x_max
    )
    y = x - log_norm
    if has_sna:
        y = y - sna_ref[0] * (log_norm * log_norm)

    # The (TR, 1) store is lane-masked, but with a large TR it is amortized and
    # its byte count is negligible vs. the (TR, V) y store for realistic V.
    # TODO(synk): lane-dense (1, TR) log_norm layout (sublane->lane move) would
    # remove the masked-store path entirely for tiny V.
    ln_ref[...] = log_norm.astype(ln_ref.dtype)
    y_ref[...] = y.astype(y_ref.dtype)


def _pick_row_tile(R, V, itemsize, row_tile):
    # dtype-aware sublane packing: 8 rows (f32), 16 (bf16), 32 (int8/fp8).
    mult = max(8, 32 // itemsize)
    if R <= mult:
        return R  # single block; block dim == full array dim is always legal
    if row_tile is None:
        # Per-row VMEM footprint: double-buffered input + double-buffered y
        # output (same dtype as x) + ~3 f32 temporaries + log_norm buffers.
        bytes_per_row = V * (4 * itemsize + 12) + 16
        tr = _TILE_BUDGET_BYTES // bytes_per_row
    else:
        tr = int(row_tile)
    tr = max(mult, (tr // mult) * mult)
    tr = min(tr, 1024)
    # Keep >=2 grid steps so the "parallel" row axis can still be split across
    # TensorCores on v7x (2 TC/chip); no effect on v5e/v6e (1 TC).
    tr = min(tr, _round_up(pl.cdiv(R, 2), mult))
    return tr


def my_log_softmax(x, self_norm_alpha=None, *, row_tile=None):
    """Pallas implementation of MyLogSoftmax.forward.

    Returns (log_norm, y) with log_norm.shape == x.shape[:-1] + (1,) and
    y.shape == x.shape (torch keepdim=True semantics).
    """
    orig_shape = x.shape
    V = orig_shape[-1]
    R = int(math.prod(orig_shape[:-1]))
    x2 = x.reshape(R, V)

    itemsize = jnp.dtype(x.dtype).itemsize
    TR = _pick_row_tile(R, V, itemsize, row_tile)
    num_tiles = pl.cdiv(R, TR)
    # No wrapper-side padding copy: the last row block may be partial; Pallas
    # pads OOB input rows (garbage, row-local only) and masks OOB output rows.

    has_sna = self_norm_alpha is not None
    kernel = functools.partial(_log_softmax_kernel, has_sna=has_sna)

    x_spec = pl.BlockSpec((TR, V), lambda i: (i, 0))
    ln_spec = pl.BlockSpec((TR, 1), lambda i: (i, 0))
    y_spec = pl.BlockSpec((TR, V), lambda i: (i, 0))

    in_specs = [x_spec]
    operands = [x2]
    if has_sna:
        # SMEM scalar: works for static Python floats and traced jax scalars.
        sna_arr = jnp.asarray(self_norm_alpha, dtype=jnp.float32).reshape((1,))
        in_specs = [pl.BlockSpec(memory_space=pltpu.MemorySpace.SMEM)] + in_specs
        operands = [sna_arr] + operands

    # TODO(synk): for very large V (vocab >= ~64K) a full (TR, V) tile no
    # longer fits the v7x VMEM budget; an online-softmax variant with a second
    # "arbitrary" grid axis over V would be needed there.
    # TODO(synk): for V < 128 the lanes are under-utilized (V/128); a
    # V->sublane / rows->lane re-layout would recover up to 128/V.
    log_norm2, y2 = pl.pallas_call(
        kernel,
        out_shape=(
            jax.ShapeDtypeStruct((R, 1), x.dtype),
            jax.ShapeDtypeStruct((R, V), x.dtype),
        ),
        grid_spec=pltpu.PrefetchScalarGridSpec(
            num_scalar_prefetch=0,
            grid=(num_tiles,),
            in_specs=in_specs,
            out_specs=[ln_spec, y_spec],
        ),
        compiler_params=pltpu.CompilerParams(
            dimension_semantics=("parallel",),
            vmem_limit_bytes=_VMEM_LIMIT_BYTES,
        ),
    )(*operands)

    log_norm = log_norm2.reshape(orig_shape[:-1] + (1,))
    y = y2.reshape(orig_shape)
    return log_norm, y


def _reference(x, sna=None):
    x = x.astype(jnp.float32)
    x_max = jnp.max(x, axis=-1, keepdims=True)
    log_norm = jnp.log(jnp.sum(jnp.exp(x - x_max), axis=-1, keepdims=True)
                       + EPSILON) + x_max
    y = x - log_norm
    if sna is not None:
        y = y - sna * jnp.power(log_norm, 2)
    return log_norm, y


if __name__ == "__main__":
    key = jax.random.PRNGKey(0)
    k1, k2 = jax.random.split(key)

    # logits: (batch=2, seq=8, vocab=32)
    x = jax.random.normal(k1, (2, 8, 32), dtype=jnp.float32) * 3.0

    # Case 1: sna=None (default)
    ln1, y1 = my_log_softmax(x)
    jax.block_until_ready((ln1, y1))
    ref_ln1, ref_y1 = _reference(x)

    # Case 2: with self-normalization alpha (SMEM scalar path)
    sna = 0.5
    ln2, y2 = my_log_softmax(x, self_norm_alpha=sna)
    jax.block_until_ready((ln2, y2))
    ref_ln2, ref_y2 = _reference(x, sna)

    # Case 3: row count (3*5=15) not a multiple of the row tile -> exercises
    # the partial last block path (no wrapper padding copy).
    x3 = jax.random.normal(k2, (3, 5, 32), dtype=jnp.float32) * 2.0
    ln3, y3 = my_log_softmax(x3, self_norm_alpha=0.25)
    jax.block_until_ready((ln3, y3))
    ref_ln3, ref_y3 = _reference(x3, 0.25)

    assert ln1.shape == (2, 8, 1) and y1.shape == (2, 8, 32)
    assert ln3.shape == (3, 5, 1) and y3.shape == (3, 5, 32)
    assert jnp.allclose(ln1, ref_ln1, atol=1e-5, rtol=1e-5)
    assert jnp.allclose(y1, ref_y1, atol=1e-5, rtol=1e-5)
    assert jnp.allclose(ln2, ref_ln2, atol=1e-5, rtol=1e-5)
    assert jnp.allclose(y2, ref_y2, atol=1e-5, rtol=1e-5)
    assert jnp.allclose(ln3, ref_ln3, atol=1e-5, rtol=1e-5)
    assert jnp.allclose(y3, ref_y3, atol=1e-5, rtol=1e-5)

    print("KERNEL_OK")
</pallas_src>

<mosaic_0001>
module attributes {stable_mosaic.version = 11 : i64} {
  func.func @_log_softmax_kernel(%arg0: i32, %arg1: memref<8x32xf32, #tpu.memory_space<vmem>>, %arg2: memref<8x1xf32, #tpu.memory_space<vmem>>, %arg3: memref<8x32xf32, #tpu.memory_space<vmem>>) attributes {dimension_semantics = [#tpu.dimension_semantics<parallel>], iteration_bounds = array<i64: 2>, scalar_prefetch = 0 : i64, scratch_operands = 0 : i64, tpu.core_type = #tpu.core_type<tc>, window_params = [{transform_indices = @transform_0, window_bounds = array<i64: 8, 32>}, {transform_indices = @transform_1, window_bounds = array<i64: 8, 1>}, {transform_indices = @transform_2, window_bounds = array<i64: 8, 32>}]} {
    %c0 = arith.constant 0 : index
    %c0_0 = arith.constant 0 : index
    %0 = vector.load %arg1[%c0, %c0_0] : memref<8x32xf32, #tpu.memory_space<vmem>>, vector<8x32xf32>
    %cst = arith.constant dense<0xFF800000> : vector<8xf32>
    %1 = vector.multi_reduction <maximumf>, %0, %cst [1] : vector<8x32xf32> to vector<8xf32>
    %2 = vector.shape_cast %1 : vector<8xf32> to vector<8x1xf32>
    %3 = vector.broadcast %2 : vector<8x1xf32> to vector<8x32xf32>
    %4 = arith.subf %0, %3 : vector<8x32xf32>
    %5 = math.exp %4 : vector<8x32xf32>
    %cst_1 = arith.constant dense<0.000000e+00> : vector<8xf32>
    %6 = vector.multi_reduction <add>, %5, %cst_1 [1] : vector<8x32xf32> to vector<8xf32>
    %7 = vector.shape_cast %6 : vector<8xf32> to vector<8x1xf32>
    %cst_2 = arith.constant 9.99999971E-10 : f32
    %8 = vector.broadcast %cst_2 : f32 to vector<8x1xf32>
    %9 = arith.addf %7, %8 : vector<8x1xf32>
    %10 = math.log %9 : vector<8x1xf32>
    %11 = arith.addf %10, %2 : vector<8x1xf32>
    %12 = vector.broadcast %11 : vector<8x1xf32> to vector<8x32xf32>
    %13 = arith.subf %0, %12 : vector<8x32xf32>
    %c0_3 = arith.constant 0 : index
    %c0_4 = arith.constant 0 : index
    %14 = vector.load %arg2[%c0_3, %c0_4] : memref<8x1xf32, #tpu.memory_space<vmem>>, vector<8x1xf32>
    tpu.vector_store %arg2[%c0_3, %c0_4], %11 {strides = array<i32>} : memref<8x1xf32, #tpu.memory_space<vmem>>, vector<8x1xf32>,
    %c0_5 = arith.constant 0 : index
    %c0_6 = arith.constant 0 : index
    %15 = vector.load %arg3[%c0_5, %c0_6] : memref<8x32xf32, #tpu.memory_space<vmem>>, vector<8x32xf32>
    tpu.vector_store %arg3[%c0_5, %c0_6], %13 {strides = array<i32>} : memref<8x32xf32, #tpu.memory_space<vmem>>, vector<8x32xf32>,
    return
  }
  func.func @transform_0(%arg0: i32) -> (i32, i32) {
    %c0_i32 = arith.constant 0 : i32
    %c0_i32_0 = arith.constant 0 : i32
    return %arg0, %c0_i32 : i32, i32
  }
  func.func @transform_1(%arg0: i32) -> (i32, i32) {
    %c0_i32 = arith.constant 0 : i32
    %c0_i32_0 = arith.constant 0 : i32
    return %arg0, %c0_i32 : i32, i32
  }
  func.func @transform_2(%arg0: i32) -> (i32, i32) {
    %c0_i32 = arith.constant 0 : i32
    %c0_i32_0 = arith.constant 0 : i32
    return %arg0, %c0_i32 : i32, i32
  }
}

</mosaic_0001>

<llo_original>
// kernel: tpu_custom_call.1
$region0: #{tpu_custom_call.1}
  #allocation0 [shape = 'u32[]', space=smem, size = 0x4, offset = 0x4, fixed_abs, tag = 'smem constant byte address 0x4 - core index']
  #allocation1 [shape = 'u32[144,128]{1,0:T(1,128)}', space=vmem, size = 0x12000, scoped, tag = 'internal scratch']
  %s0 = inlined_call_operand.hbm [shape: f32[16,32], index: 0, kind: input, shape index: {}]
  %s1 = inlined_call_operand.vmem [shape: f32[16,1], index: 1, kind: output, shape index: {0}]
  %s2 = inlined_call_operand.hbm [shape: f32[16,32], index: 2, kind: output, shape index: {1}]
  %3 = xla_tuple %s1, %s2
  %s4 = sld [smem:[#allocation0]]
  $region49: #{tpu_custom_call.1} parent=0
    _
  %s6 = ssub.s32 1, %s4
  %s7 = scalar_select 0, %s6, %s4
  $region1: #{tpu_custom_call.1} parent=0
    #allocation2 [shape = 'u8[8192]{0}', space=vmem, size = 0x2000, scoped, tag = 'input window, operand 0']
    #allocation3 [shape = 's32[2]{0}', space=sflag, size = 0x8, scoped, tag = 'scoped memory for tpu_custom_call.1']
    #allocation4 [shape = 's32[2]{0}', space=sflag, size = 0x8, scoped, tag = 'scoped memory for tpu_custom_call.1']
    #allocation5 [shape = 'u8[8192]{0}', space=vmem, size = 0x2000, scoped, tag = 'output window, operand 1']
    %8 = vsyncpa [#allocation3], 0
    %s9 = scalar_lea.sflag [#allocation3], 1
    %10 = vsyncpa %s9, 0
    %11 = vsyncpa [#allocation4], 0
    %s12 = scalar_lea.sflag [#allocation4], 1
    %13 = vsyncpa %s12, 0
    loop: start=0, step=1, limit=4
    $region2: #{tpu_custom_call.1} parent=1 // loop_pre_header
      _
    $region3: #{tpu_custom_call.1} parent=1 // loop_header
      %s15 = sphi 0, %s19
      %p16 = scmp.ge.s32.totalorder %s15, 4
      %s25 = sphi 0, %s27
      %s28 = sphi 0, %s25
      %s29 = sphi 0, %s28
      %s45 = sphi 0, %s29
      %s51 = sphi 0, %s53
      %s54 = sphi 0, %s51
      %s55 = sphi 0, %s54
      %s71 = sphi 0, %s55
      %s77 = sphi 0, %s79
      %s80 = sphi 0, %s77
      %s81 = sphi 0, %s80
      %s97 = sphi 0, %s81
    $region4: #{tpu_custom_call.1} parent=1 // loop_header_branch
      %18 = sbr.rel (%p16) target = $region8
    $region5: #{tpu_custom_call.1} parent=1 // loop_body
      %s20 = ssub.s32 %s15, 1
      %s21 = ssub.s32 %s15, 2
      %s22 = sadd.s32 %s15, 1
      %s23 = ssub.s32 %s15, %s22
      %p24 = scmp.eq.s32.totalorder %s23, 0
      %s26 = sadd.s32 %s25, 1
      %s27 = scalar_select %p24, %s25, %s26
      %p30 = pneg %p24
      %p31 = scmp.eq.s32.totalorder %s15, 1
      %p32 = por %p30, %p31
      %p33 = scmp.ne.s32.totalorder %s25, %s28
      %p34 = scmp.eq.s32.totalorder %s15, 0
      %p35 = por %p33, %p34
      %p36 = scmp.ne.s32.totalorder %s25, %s28
      %p37 = scmp.eq.s32.totalorder %s20, 1
      %p38 = por %p36, %p37
      %p39 = scmp.ne.s32.totalorder %s28, %s29
      %p40 = scmp.eq.s32.totalorder %s20, 0
      %p41 = por %p39, %p40
      %p42 = scmp.ne.s32.totalorder %s28, %s29
      %p43 = scmp.eq.s32.totalorder %s21, 1
      %p44 = por %p42, %p43
      %p46 = scmp.ne.s32.totalorder %s29, %s45
      %p47 = scmp.eq.s32.totalorder %s21, 0
      %p48 = por %p46, %p47
      %s49 = ssub.s32 %s15, %s22
      %p50 = scmp.eq.s32.totalorder %s49, 0
      %s52 = sadd.s32 %s51, 1
      %s53 = scalar_select %p50, %s51, %s52
      %p56 = pneg %p50
      %p57 = scmp.eq.s32.totalorder %s15, 1
      %p58 = por %p56, %p57
      %p59 = scmp.ne.s32.totalorder %s51, %s54
      %p60 = scmp.eq.s32.totalorder %s15, 0
      %p61 = por %p59, %p60
      %p62 = scmp.ne.s32.totalorder %s51, %s54
      %p63 = scmp.eq.s32.totalorder %s20, 1
      %p64 = por %p62, %p63
      %p65 = scmp.ne.s32.totalorder %s54, %s55
      %p66 = scmp.eq.s32.totalorder %s20, 0
      %p67 = por %p65, %p66
      %p68 = scmp.ne.s32.totalorder %s54, %s55
      %p69 = scmp.eq.s32.totalorder %s21, 1
      %p70 = por %p68, %p69
      %p72 = scmp.ne.s32.totalorder %s55, %s71
      %p73 = scmp.eq.s32.totalorder %s21, 0
      %p74 = por %p72, %p73
      %s75 = ssub.s32 %s15, %s22
      %p76 = scmp.eq.s32.totalorder %s75, 0
      %s78 = sadd.s32 %s77, 1
      %s79 = scalar_select %p76, %s77, %s78
      %p82 = pneg %p76
      %p83 = scmp.eq.s32.totalorder %s15, 1
      %p84 = por %p82, %p83
      %p85 = scmp.ne.s32.totalorder %s77, %s80
      %p86 = scmp.eq.s32.totalorder %s15, 0
      %p87 = por %p85, %p86
      %p88 = scmp.ne.s32.totalorder %s77, %s80
      %p89 = scmp.eq.s32.totalorder %s20, 1
      %p90 = por %p88, %p89
      %p91 = scmp.ne.s32.totalorder %s80, %s81
      %p92 = scmp.eq.s32.totalorder %s20, 0
      %p93 = por %p91, %p92
      %p94 = scmp.ne.s32.totalorder %s80, %s81
      %p95 = scmp.eq.s32.totalorder %s21, 1
      %p96 = por %p94, %p95
      %p98 = scmp.ne.s32.totalorder %s81, %s97
      %p99 = scmp.eq.s32.totalorder %s21, 0
      %p100 = por %p98, %p99
      %p101 = scmp.le.s32.totalorder 1, %s15
      %p102 = scmp.lt.s32.totalorder %s15, 3
      %p103 = pnand %p101, %p102
      %p104 = pneg %p103
      // Predicated region
      $region9: #{tpu_custom_call.1} parent=5 // pred_check
        _
      $region10: #{tpu_custom_call.1} parent=5 // pred_check_branch
        %106 = sbr.rel (%p103) target = $region12
      $region11: #{tpu_custom_call.1} parent=5 // pred_region
        %s107 = ssub.s32 %s15, 1
      $region12: #{tpu_custom_call.1} parent=5 // pred_fallthru
        _
      %p108 = scmp.lt.s32.totalorder %s15, 2
      // Predicated region
      $region13: #{tpu_custom_call.1} parent=5 // pred_check
        %p109 = pneg %p108
      $region14: #{tpu_custom_call.1} parent=5 // pred_check_branch
        %111 = sbr.rel (%p109) target = $region16
      $region15: #{tpu_custom_call.1} parent=5 // pred_region
        // Predicated region
        $region17: #{tpu_custom_call.1} parent=15 // pred_check
          %p112 = pneg %p35
        $region18: #{tpu_custom_call.1} parent=15 // pred_check_branch
          %114 = sbr.rel (%p112) target = $region20
        $region19: #{tpu_custom_call.1} parent=15 // pred_region
          %s115 = sand.u32 %s25, 1
          %s116 = scalar_lea.sflag [#allocation3], %s115
          %s117 = sand.u32 %s25, 1
          %s118 = smul.addr %s117, 8
          %s119 = scalar_lea.vmem [#allocation2], %s118
          %s121 = ssub.s32 128, 128
          %122 = vsyncadd %s116, %s121
          %s123 = smul.addr %s15, 128
          %s124 = scalar_lea.hbm %s0, %s123
          %s126 = sshll.u32 %s119, 4
          %s127 = int_to_ptr.vmem [resolvable:$true] %s126
          %129 = dma.hbm_to_vmem [thread:$0]  %s124, 128, %s127, %s116
        $region20: #{tpu_custom_call.1} parent=15 // pred_fallthru
          _
      $region16: #{tpu_custom_call.1} parent=5 // pred_fallthru
        _
      %p130 = scmp.le.s32.totalorder 1, %s15
      %p131 = scmp.lt.s32.totalorder %s15, 3
      %p132 = pnand %p130, %p131
      %p133 = pneg %p132
      // Predicated region
      $region21: #{tpu_custom_call.1} parent=5 // pred_check
        _
      $region22: #{tpu_custom_call.1} parent=5 // pred_check_branch
        %135 = sbr.rel (%p132) target = $region24
      $region23: #{tpu_custom_call.1} parent=5 // pred_region
        %s136 = ssub.s32 %s15, 1
        %s137 = sand.u32 %s28, 1
        %s138 = scalar_lea.sflag [#allocation3], %s137
        %s139 = sand.u32 %s28, 1
        %s140 = smul.addr %s139, 8
        %s141 = scalar_lea.vmem [#allocation2], %s140
        // Predicated region
        $region25: #{tpu_custom_call.1} parent=23 // pred_check
          %p142 = pneg %p41
        $region26: #{tpu_custom_call.1} parent=23 // pred_check_branch
          %144 = sbr.rel (%p142) target = $region28
        $region27: #{tpu_custom_call.1} parent=23 // pred_region
          %145 = dma.done %s138, 128
        $region28: #{tpu_custom_call.1} parent=23 // pred_fallthru
          _
        %s146 = sand.u32 %s28, 1
        %s147 = scalar_lea.sflag [#allocation3], %s146
        %s148 = sand.u32 %s28, 1
        %s149 = smul.addr %s148, 8
        %s150 = scalar_lea.vmem [#allocation2], %s149
        %p151 = pneg %p41
        %p152 = pneg %p38
        %p153 = pneg %p67
        %p154 = pneg %p64
        %p155 = scmp.lt.s32.totalorder %s20, 1
        %s156 = scalar_select %p155, %s20, 1
        %s157 = smul.addr %s156, 8
        %s158 = scalar_lea.vmem %s1, %s157
        %p159 = pneg %p93
        %p160 = pneg %p90
        %s161 = sand.u32 %s80, 1
        %s162 = scalar_lea.sflag [#allocation4], %s161
        %s163 = sand.u32 %s80, 1
        %s164 = smul.addr %s163, 8
        %s165 = scalar_lea.vmem [#allocation5], %s164
        %p166 = scmp.lt.s32.totalorder %s20, 1
        %s167 = scalar_select %p166, %s20, 1
        %s168 = smul.addr %s167, 8
        %s169 = scalar_lea.vmem %s1, %s168
        %v170 = vld [vmem:[%s141] sm:$0xff]
        %vm171 = vcmask 261120
        %v172 = vsel %vm171, %v170, -inf
        %173 = vmax.xlane.f32.xlu0 %v172
        %v174 = vpop.xlane.xlu0 %173
        %v175 = vsub.f32 %v170, %v174
        %v176 = vmul.f32 %v175, 1.442695
        %v177 = vpow.pop %v176
        %v178 = vsel %vm171, %v177, 0.0
        %179 = vadd.xlane.f32.xlu0 %v178
        %v180 = vpop.xlane.xlu0 %179
        %v181 = vadd.f32 %v180, 1e-09
        %v182 = vlog2.pop %v181
        %v183 = vmul.f32 %v182, 0.6931472
        %v184 = vadd.f32 %v183, %v174
        %v185 = vsub.f32 %v170, %v184
        %vm186 = vcmask 7168
        %187 = vst.msk [vmem:[%s169] sm:$0xff] %vm186, %v184
        %188 = vst.msk [vmem:[%s165] sm:$0xff] %vm171, %v185
        %p189 = scmp.lt.s32.totalorder %s20, 1
        %s190 = scalar_select %p189, %s20, 1
        %s191 = smul.addr %s190, 8
        %s192 = scalar_lea.vmem %s1, %s191
        %s193 = sand.u32 %s80, 1
        %s194 = scalar_lea.sflag [#allocation4], %s193
        %s195 = sand.u32 %s80, 1
        %s196 = smul.addr %s195, 8
        %s197 = scalar_lea.vmem [#allocation5], %s196
        // Predicated region
        $region29: #{tpu_custom_call.1} parent=23 // pred_check
          %p198 = pneg %p64
        $region30: #{tpu_custom_call.1} parent=23 // pred_check_branch
          %200 = sbr.rel (%p198) target = $region32
        $region31: #{tpu_custom_call.1} parent=23 // pred_region
          _
        $region32: #{tpu_custom_call.1} parent=23 // pred_fallthru
          _
        // Predicated region
        $region33: #{tpu_custom_call.1} parent=23 // pred_check
          %p201 = pneg %p90
        $region34: #{tpu_custom_call.1} parent=23 // pred_check_branch
          %203 = sbr.rel (%p201) target = $region36
        $region35: #{tpu_custom_call.1} parent=23 // pred_region
          %s205 = ssub.s32 128, 128
          %206 = vsyncadd %s194, %s205
          %s207 = smul.addr %s20, 128
          %s208 = scalar_lea.hbm %s2, %s207
          %s210 = sshll.u32 %s197, 4
          %s211 = int_to_ptr.vmem [resolvable:$true] %s210
          %213 = dma.vmem_to_hbm [thread:$0]  %s211, 128, %s208, %s194
        $region36: #{tpu_custom_call.1} parent=23 // pred_fallthru
          _
      $region24: #{tpu_custom_call.1} parent=5 // pred_fallthru
        _
      %p214 = scmp.le.s32.totalorder 2, %s15
      // Predicated region
      $region37: #{tpu_custom_call.1} parent=5 // pred_check
        %p215 = pneg %p214
      $region38: #{tpu_custom_call.1} parent=5 // pred_check_branch
        %217 = sbr.rel (%p215) target = $region40
      $region39: #{tpu_custom_call.1} parent=5 // pred_region
        %s218 = ssub.s32 %s15, 2
        // Predicated region
        $region41: #{tpu_custom_call.1} parent=39 // pred_check
          %p219 = pneg %p70
        $region42: #{tpu_custom_call.1} parent=39 // pred_check_branch
          %221 = sbr.rel (%p219) target = $region44
        $region43: #{tpu_custom_call.1} parent=39 // pred_region
          %p222 = scmp.lt.s32.totalorder %s21, 1
          %s223 = scalar_select %p222, %s21, 1
          %s224 = smul.addr %s223, 8
          %s225 = scalar_lea.vmem %s1, %s224
        $region44: #{tpu_custom_call.1} parent=39 // pred_fallthru
          _
        // Predicated region
        $region45: #{tpu_custom_call.1} parent=39 // pred_check
          %p226 = pneg %p96
        $region46: #{tpu_custom_call.1} parent=39 // pred_check_branch
          %228 = sbr.rel (%p226) target = $region48
        $region47: #{tpu_custom_call.1} parent=39 // pred_region
          %s229 = sand.u32 %s81, 1
          %s230 = scalar_lea.sflag [#allocation4], %s229
          %s231 = sand.u32 %s81, 1
          %s232 = smul.addr %s231, 8
          %s233 = scalar_lea.vmem [#allocation5], %s232
          %234 = dma.done %s230, 128
        $region48: #{tpu_custom_call.1} parent=39 // pred_fallthru
          _
      $region40: #{tpu_custom_call.1} parent=5 // pred_fallthru
        _
    $region6: #{tpu_custom_call.1} parent=1 // loop_footer
      %s19 = sadd.s32 1, %s15
    $region7: #{tpu_custom_call.1} parent=1 // loop_footer_branch
      %14 = sbr.rel target = $region3
    $region8: #{tpu_custom_call.1} parent=1 // loop_exit
      _
    %235 = vsyncpa [#allocation3], 1
    %s236 = scalar_lea.sflag [#allocation3], 1
    %237 = vsyncpa %s236, 1
    %238 = vsyncpa [#allocation4], 1
    %s239 = scalar_lea.sflag [#allocation4], 1
    %240 = vsyncpa %s239, 1

</llo_original>
